<compile_context>
chip_gen: v5e
topology: v5e:2x2
jax: 0.10.0
libtpu: 0.0.40
codegen_flags: <defaults>
</compile_context>

<pallas_src>
import numpy as np
import jax
import jax.numpy as jnp
from jax.experimental import pallas as pl
from jax.experimental.pallas import tpu as pltpu


def _round_up(x: int, m: int) -> int:
    return ((x + m - 1) // m) * m


def _embedding_kernel(ids_ref, w_ref, out_ref):
    """One batch tile: one-hot(ids) @ block-diag(table) -> (TB, F*D)."""
    ids = ids_ref[...]                      # (TB, F) int32, offsets already folded in
    tb, num_fields = ids.shape
    vpad = w_ref.shape[0]

    # onehot[b, v] = number of fields f with ids[b, f] == v  (field id ranges
    # are disjoint, so at most one field contributes per column block below).
    v_iota = jax.lax.broadcasted_iota(jnp.int32, (tb, vpad), 1)
    onehot = (v_iota == ids[:, 0:1]).astype(w_ref.dtype)
    for f in range(1, num_fields):          # static, small F -> unrolled VPU compares
        onehot = onehot + (v_iota == ids[:, f:f + 1]).astype(w_ref.dtype)

    # Single MXU matmul producing the full lane-dense (TB, F*D) output slab.
    out_ref[...] = jnp.dot(
        onehot, w_ref[...], preferred_element_type=jnp.float32
    ).astype(out_ref.dtype)


def features_embedding(x, table, offsets, *, tile_rows: int = 256):
    """x: (B, F) integer field indices; table: (V, D) float; offsets: (F,) int.

    Returns (B, F, D) = table[x + offsets], matching the PyTorch module.
    """
    B, F = x.shape
    V, D = table.shape

    # Fold offsets into the indices and clamp to [0, V) so the one-hot is
    # always in-bounds (PyTorch nn.Embedding would raise on out-of-range ids;
    # in-contract inputs are unaffected by the clamp).
    ids = jnp.clip(
        x.astype(jnp.int32) + offsets.astype(jnp.int32)[None, :], 0, V - 1
    )

    # Pad the contraction dim to 256: multiple of 256 (v6e/v7x MXU) and of 128
    # (v5e MXU).
    vpad = _round_up(V, 256)

    # Build the block-diagonal weight (Vpad, F*D): rows belonging to field f
    # (derived from the offsets) are placed in column block f*D:(f+1)*D.
    # One-time wrapper-side cost; for this module V*F*D is tiny.
    f_bounds = jnp.concatenate(
        [offsets.astype(jnp.int32), jnp.asarray([V], dtype=jnp.int32)]
    )
    rows = jnp.arange(V, dtype=jnp.int32)
    w_bd = jnp.zeros((vpad, F * D), dtype=table.dtype)
    for f in range(F):
        in_field = (rows >= f_bounds[f]) & (rows < f_bounds[f + 1])
        w_bd = w_bd.at[:V, f * D:(f + 1) * D].set(
            jnp.where(in_field[:, None], table, jnp.zeros_like(table))
        )

    # Batch tiling: TB rows per grid step (multiple of 8, capped by tile_rows);
    # pad the batch so it divides evenly.  Padded rows use id 0 (in-bounds) and
    # are sliced off afterwards.
    tb = min(tile_rows, _round_up(B, 8))
    b_pad = _round_up(B, tb)
    if b_pad != B:
        ids = jnp.pad(ids, ((0, b_pad - B), (0, 0)))

    out_flat = pl.pallas_call(
        _embedding_kernel,
        out_shape=jax.ShapeDtypeStruct((b_pad, F * D), table.dtype),
        grid_spec=pltpu.PrefetchScalarGridSpec(
            num_scalar_prefetch=0,
            grid=(b_pad // tb,),
            in_specs=[
                # Per-tile ids (VMEM, O(TB) not O(B) on-chip).
                pl.BlockSpec((tb, F), lambda i: (i, 0)),
                # Resident block-diagonal table: constant block index -> one DMA.
                pl.BlockSpec((vpad, F * D), lambda i: (0, 0)),
            ],
            out_specs=pl.BlockSpec((tb, F * D), lambda i: (i, 0)),
        ),
        compiler_params=pltpu.CompilerParams(
            dimension_semantics=("parallel",)  # batch tiles independent
        ),
    )(ids, w_bd)

    return out_flat[:B].reshape(B, F, D)


if __name__ == "__main__":
    # Module config (small, deterministic).
    field_dims = [3, 4, 5, 6]          # sum = 18
    embedding_dim = 32                 # F * D = 128 -> lane-dense output slab
    V = int(np.sum(field_dims))
    F = len(field_dims)
    B = 2

    key = jax.random.PRNGKey(0)
    k_w, k_x = jax.random.split(key)

    # torch.nn.init.xavier_uniform_ on (V, D): U(-a, a), a = sqrt(6 / (V + D))
    bound = float(np.sqrt(6.0 / (V + embedding_dim)))
    table = jax.random.uniform(k_w, (V, embedding_dim),
                               dtype=jnp.float32, minval=-bound, maxval=bound)

    # offsets = (0, *cumsum(field_dims)[:-1])
    offsets = jnp.asarray(
        np.concatenate([[0], np.cumsum(field_dims)[:-1]]).astype(np.int32))

    # x[b, f] in [0, field_dims[f])
    fdims = jnp.asarray(field_dims, dtype=jnp.int32)
    x = (jax.random.randint(k_x, (B, F), 0, 10_000, dtype=jnp.int32)
         % fdims[None, :]).astype(jnp.int32)

    y = features_embedding(x, table, offsets)
    y = jax.block_until_ready(y)

    # Reference: plain JAX gather with offsets.
    y_ref = table[x + offsets[None, :]]
    assert y.shape == (B, F, embedding_dim)
    assert np.allclose(np.asarray(y), np.asarray(y_ref), atol=1e-6), "mismatch"

    print("KERNEL_OK")
</pallas_src>

<mosaic_0001>
module attributes {stable_mosaic.version = 11 : i64} {
  func.func @_embedding_kernel(%arg0: i32, %arg1: memref<8x4xi32, #tpu.memory_space<vmem>>, %arg2: memref<256x128xf32, #tpu.memory_space<vmem>>, %arg3: memref<8x128xf32, #tpu.memory_space<vmem>>) attributes {dimension_semantics = [#tpu.dimension_semantics<parallel>], iteration_bounds = array<i64: 1>, scalar_prefetch = 0 : i64, scratch_operands = 0 : i64, tpu.core_type = #tpu.core_type<tc>, window_params = [{transform_indices = @transform_0, window_bounds = array<i64: 8, 4>}, {pipeline_mode = #tpu.pipeline_mode<synchronous>, transform_indices = @transform_1, window_bounds = array<i64: 256, 128>}, {transform_indices = @transform_2, window_bounds = array<i64: 8, 128>}]} {
    %c0 = arith.constant 0 : index
    %c0_0 = arith.constant 0 : index
    %0 = vector.load %arg1[%c0, %c0_0] : memref<8x4xi32, #tpu.memory_space<vmem>>, vector<8x4xi32>
    %1 = tpu.iota {dimensions = array<i32: 1>} : vector<8x256xi32>
    %2 = vector.extract_strided_slice %0 {offsets = [0, 0], sizes = [8, 1], strides = [1, 1]} : vector<8x4xi32> to vector<8x1xi32>
    %3 = vector.broadcast %2 : vector<8x1xi32> to vector<8x256xi32>
    %4 = arith.cmpi eq, %1, %3 : vector<8x256xi32>
    %5 = arith.extui %4 : vector<8x256xi1> to vector<8x256xi32>
    %6 = arith.sitofp %5 : vector<8x256xi32> to vector<8x256xf32>
    %7 = vector.extract_strided_slice %0 {offsets = [0, 1], sizes = [8, 1], strides = [1, 1]} : vector<8x4xi32> to vector<8x1xi32>
    %8 = vector.broadcast %7 : vector<8x1xi32> to vector<8x256xi32>
    %9 = arith.cmpi eq, %1, %8 : vector<8x256xi32>
    %10 = arith.extui %9 : vector<8x256xi1> to vector<8x256xi32>
    %11 = arith.sitofp %10 : vector<8x256xi32> to vector<8x256xf32>
    %12 = arith.addf %6, %11 : vector<8x256xf32>
    %13 = vector.extract_strided_slice %0 {offsets = [0, 2], sizes = [8, 1], strides = [1, 1]} : vector<8x4xi32> to vector<8x1xi32>
    %14 = vector.broadcast %13 : vector<8x1xi32> to vector<8x256xi32>
    %15 = arith.cmpi eq, %1, %14 : vector<8x256xi32>
    %16 = arith.extui %15 : vector<8x256xi1> to vector<8x256xi32>
    %17 = arith.sitofp %16 : vector<8x256xi32> to vector<8x256xf32>
    %18 = arith.addf %12, %17 : vector<8x256xf32>
    %19 = vector.extract_strided_slice %0 {offsets = [0, 3], sizes = [8, 1], strides = [1, 1]} : vector<8x4xi32> to vector<8x1xi32>
    %20 = vector.broadcast %19 : vector<8x1xi32> to vector<8x256xi32>
    %21 = arith.cmpi eq, %1, %20 : vector<8x256xi32>
    %22 = arith.extui %21 : vector<8x256xi1> to vector<8x256xi32>
    %23 = arith.sitofp %22 : vector<8x256xi32> to vector<8x256xf32>
    %24 = arith.addf %18, %23 : vector<8x256xf32>
    %c0_1 = arith.constant 0 : index
    %c0_2 = arith.constant 0 : index
    %25 = vector.load %arg2[%c0_1, %c0_2] : memref<256x128xf32, #tpu.memory_space<vmem>>, vector<256x128xf32>
    %cst = arith.constant dense<0.000000e+00> : vector<8x128xf32>
    %26 = tpu.matmul %24, %25, %cst {dimension_numbers = #tpu.dot_dimension_numbers<[1], [0], [0], [1], [0, 0, 1, 1], [], []>} : vector<8x256xf32>, vector<256x128xf32>, vector<8x128xf32> -> vector<8x128xf32>
    %c0_3 = arith.constant 0 : index
    %c0_4 = arith.constant 0 : index
    %27 = vector.load %arg3[%c0_3, %c0_4] : memref<8x128xf32, #tpu.memory_space<vmem>>, vector<8x128xf32>
    tpu.vector_store %arg3[%c0_3, %c0_4], %26 {strides = array<i32>} : memref<8x128xf32, #tpu.memory_space<vmem>>, vector<8x128xf32>,
    return
  }
  func.func @transform_0(%arg0: i32) -> (i32, i32) {
    %c0_i32 = arith.constant 0 : i32
    %c0_i32_0 = arith.constant 0 : i32
    return %arg0, %c0_i32 : i32, i32
  }
  func.func @transform_1(%arg0: i32) -> (i32, i32) {
    %c0_i32 = arith.constant 0 : i32
    %c0_i32_0 = arith.constant 0 : i32
    %c0_i32_1 = arith.constant 0 : i32
    return %c0_i32, %c0_i32_0 : i32, i32
  }
  func.func @transform_2(%arg0: i32) -> (i32, i32) {
    %c0_i32 = arith.constant 0 : i32
    %c0_i32_0 = arith.constant 0 : i32
    return %arg0, %c0_i32 : i32, i32
  }
}

</mosaic_0001>

<llo_original>
// kernel: tpu_custom_call.1
$region0: #{tpu_custom_call.1}
  #allocation0 [shape = 'u32[]', space=smem, size = 0x4, offset = 0x4, fixed_abs, tag = 'smem constant byte address 0x4 - core index']
  #allocation1 [shape = 'u32[72,128]{1,0:T(1,128)}', space=vmem, size = 0x9000, scoped, tag = 'internal scratch']
  %s0 = inlined_call_operand.vmem [shape: s32[8,4], index: 0, kind: input, shape index: {}]
  %s1 = inlined_call_operand.hbm [shape: f32[256,128], index: 1, kind: input, shape index: {}]
  %s2 = inlined_call_operand.hbm [shape: f32[8,128], index: 2, kind: output, shape index: {}]
  %s3 = sld [smem:[#allocation0]]
  $region22: #{tpu_custom_call.1} parent=0
    _
  %s5 = ssub.s32 1, %s3
  %s6 = scalar_select 0, %s5, %s3
  $region1: #{tpu_custom_call.1} parent=0
    #allocation2 [shape = 'u8[131072]{0}', space=vmem, size = 0x20000, scoped, tag = 'input window, operand 1, single buffered']
    #allocation3 [shape = 's32[1]{0}', space=sflag, size = 0x4, scoped, tag = 'scoped memory for tpu_custom_call.1']
    #allocation4 [shape = 's32[1]{0}', space=sflag, size = 0x4, scoped, tag = 'scoped memory for tpu_custom_call.1']
    #allocation5 [shape = 'u8[4096]{0}', space=vmem, size = 0x1000, scoped, tag = 'output window, operand 0, single buffered']
    %7 = vsyncpa [#allocation3], 0
    %8 = vsyncpa [#allocation4], 0
    // Predicated region
    $region2: #{tpu_custom_call.1} parent=1 // pred_check
      _
    $region3: #{tpu_custom_call.1} parent=1 // pred_check_branch
      %10 = sbr.rel (0) target = $region5
    $region4: #{tpu_custom_call.1} parent=1 // pred_region
      _
    $region5: #{tpu_custom_call.1} parent=1 // pred_fallthru
      _
    // Predicated region
    $region6: #{tpu_custom_call.1} parent=1 // pred_check
      _
    $region7: #{tpu_custom_call.1} parent=1 // pred_check_branch
      %12 = sbr.rel (0) target = $region9
    $region8: #{tpu_custom_call.1} parent=1 // pred_region
      %14 = vsyncadd [#allocation3], 0
      %s15 = sshll.u32 %s1, 4
      %s16 = int_to_ptr.hbm [resolvable:$true] %s15
      %s17 = sshll.u32 [#allocation2], 4
      %s18 = int_to_ptr.vmem [resolvable:$true] %s17
      %23 = dma.hbm_to_vmem [thread:$0]  %s16, 4096, %s18, [#allocation3], 128, 128, 8
    $region9: #{tpu_custom_call.1} parent=1 // pred_fallthru
      _
    // Predicated region
    $region10: #{tpu_custom_call.1} parent=1 // pred_check
      _
    $region11: #{tpu_custom_call.1} parent=1 // pred_check_branch
      %25 = sbr.rel (0) target = $region13
    $region12: #{tpu_custom_call.1} parent=1 // pred_region
      %27 = dma.done [#allocation3], 4096
    $region13: #{tpu_custom_call.1} parent=1 // pred_fallthru
      _
    %v28 = vld [vmem:[%s0] sm:$0xff]
    %v29 = vlaneseq
    %v30 = vand.u32 %v29, 127
    %v31 = vadd.s32 %v30, 128
    %32 = vset.pattern.permute.xlu0 0
    %33 = vperm.xlu0 %32, %v28
    %v34 = vpop.permute.xlu0 %33
    %vm35 = vcmp.eq.s32.totalorder %v30, %v34
    %vm36 = vcmp.eq.s32.totalorder %v31, %v34
    %v37 = vsel %vm35, 1, 0
    %v38 = vsel %vm36, 1, 0
    %v39 = vcvt.s32.f32 %v37
    %v40 = vcvt.s32.f32 %v38
    %41 = vset.pattern.permute.xlu0 1
    %42 = vperm.xlu0 %41, %v28
    %v43 = vpop.permute.xlu0 %42
    %vm44 = vcmp.eq.s32.totalorder %v30, %v43
    %vm45 = vcmp.eq.s32.totalorder %v31, %v43
    %v46 = vsel %vm44, 1, 0
    %v47 = vsel %vm45, 1, 0
    %v48 = vcvt.s32.f32 %v46
    %v49 = vcvt.s32.f32 %v47
    %v50 = vadd.f32 %v39, %v48
    %v51 = vadd.f32 %v40, %v49
    %52 = vset.pattern.permute.xlu0 2
    %53 = vperm.xlu0 %52, %v28
    %v54 = vpop.permute.xlu0 %53
    %vm55 = vcmp.eq.s32.totalorder %v30, %v54
    %vm56 = vcmp.eq.s32.totalorder %v31, %v54
    %v57 = vsel %vm55, 1, 0
    %v58 = vsel %vm56, 1, 0
    %v59 = vcvt.s32.f32 %v57
    %v60 = vcvt.s32.f32 %v58
    %v61 = vadd.f32 %v50, %v59
    %v62 = vadd.f32 %v51, %v60
    %63 = vset.pattern.permute.xlu0 3
    %64 = vperm.xlu0 %63, %v28
    %v65 = vpop.permute.xlu0 %64
    %vm66 = vcmp.eq.s32.totalorder %v30, %v65
    %vm67 = vcmp.eq.s32.totalorder %v31, %v65
    %v68 = vsel %vm66, 1, 0
    %v69 = vsel %vm67, 1, 0
    %v70 = vcvt.s32.f32 %v68
    %v71 = vcvt.s32.f32 %v69
    %v72 = vadd.f32 %v61, %v70
    %v73 = vadd.f32 %v62, %v71
    %v74 = vld [vmem:[#allocation2] sm:$0xff]
    %v75 = vld [vmem:[#allocation2 + $0x8] sm:$0xff]
    %v76 = vld [vmem:[#allocation2 + $0x10] sm:$0xff]
    %v77 = vld [vmem:[#allocation2 + $0x18] sm:$0xff]
    %v78 = vld [vmem:[#allocation2 + $0x20] sm:$0xff]
    %v79 = vld [vmem:[#allocation2 + $0x28] sm:$0xff]
    %v80 = vld [vmem:[#allocation2 + $0x30] sm:$0xff]
    %v81 = vld [vmem:[#allocation2 + $0x38] sm:$0xff]
    %v82 = vld [vmem:[#allocation2 + $0x40] sm:$0xff]
    %v83 = vld [vmem:[#allocation2 + $0x48] sm:$0xff]
    %v84 = vld [vmem:[#allocation2 + $0x50] sm:$0xff]
    %v85 = vld [vmem:[#allocation2 + $0x58] sm:$0xff]
    %v86 = vld [vmem:[#allocation2 + $0x60] sm:$0xff]
    %v87 = vld [vmem:[#allocation2 + $0x68] sm:$0xff]
    %v88 = vld [vmem:[#allocation2 + $0x70] sm:$0xff]
    %v89 = vld [vmem:[#allocation2 + $0x78] sm:$0xff]
    %v90 = vld [vmem:[#allocation2 + $0x80] sm:$0xff]
    %v91 = vld [vmem:[#allocation2 + $0x88] sm:$0xff]
    %v92 = vld [vmem:[#allocation2 + $0x90] sm:$0xff]
    %v93 = vld [vmem:[#allocation2 + $0x98] sm:$0xff]
    %v94 = vld [vmem:[#allocation2 + $0xa0] sm:$0xff]
    %v95 = vld [vmem:[#allocation2 + $0xa8] sm:$0xff]
    %v96 = vld [vmem:[#allocation2 + $0xb0] sm:$0xff]
    %v97 = vld [vmem:[#allocation2 + $0xb8] sm:$0xff]
    %v98 = vld [vmem:[#allocation2 + $0xc0] sm:$0xff]
    %v99 = vld [vmem:[#allocation2 + $0xc8] sm:$0xff]
    %v100 = vld [vmem:[#allocation2 + $0xd0] sm:$0xff]
    %v101 = vld [vmem:[#allocation2 + $0xd8] sm:$0xff]
    %v102 = vld [vmem:[#allocation2 + $0xe0] sm:$0xff]
    %v103 = vld [vmem:[#allocation2 + $0xe8] sm:$0xff]
    %v104 = vld [vmem:[#allocation2 + $0xf0] sm:$0xff]
    %v105 = vld [vmem:[#allocation2 + $0xf8] sm:$0xff]
    %106 = vmatpush.msra.mxu0 %v89
    %107 = vmatpush.msra.mxu0 %v88
    %108 = vmatpush.msra.mxu0 %v87
    %109 = vmatpush.msra.mxu0 %v86
    %110 = vmatpush.msra.mxu0 %v85
    %111 = vmatpush.msra.mxu0 %v84
    %112 = vmatpush.msra.mxu0 %v83
    %113 = vmatpush.msra.mxu0 %v82
    %114 = vmatpush.msra.mxu0 %v81
    %115 = vmatpush.msra.mxu0 %v80
    %116 = vmatpush.msra.mxu0 %v79
    %117 = vmatpush.msra.mxu0 %v78
    %118 = vmatpush.msra.mxu0 %v77
    %119 = vmatpush.msra.mxu0 %v76
    %120 = vmatpush.msra.mxu0 %v75
    %121 = vmatpush.msra.mxu0 %v74
    %122 = vmatmul.f32.gmra.mxu0 %v72
    %v123 = vpop.f32.mrf.mxu0
    %v124 = vadd.f32 0.0, %v123
    %125 = vdwg.mxu0
    %126 = vmatpush.msra.mxu0 %v105
    %127 = vmatpush.msra.mxu0 %v104
    %128 = vmatpush.msra.mxu0 %v103
    %129 = vmatpush.msra.mxu0 %v102
    %130 = vmatpush.msra.mxu0 %v101
    %131 = vmatpush.msra.mxu0 %v100
    %132 = vmatpush.msra.mxu0 %v99
    %133 = vmatpush.msra.mxu0 %v98
    %134 = vmatpush.msra.mxu0 %v97
    %135 = vmatpush.msra.mxu0 %v96
    %136 = vmatpush.msra.mxu0 %v95
    %137 = vmatpush.msra.mxu0 %v94
    %138 = vmatpush.msra.mxu0 %v93
    %139 = vmatpush.msra.mxu0 %v92
    %140 = vmatpush.msra.mxu0 %v91
    %141 = vmatpush.msra.mxu0 %v90
    %142 = vmatmul.f32.gmra.mxu0 %v73
    %v143 = vpop.f32.mrf.mxu0
    %v144 = vadd.f32 %v124, %v143
    %145 = vdwg.mxu0
    %146 = vst [vmem:[#allocation5] sm:$0xff] %v144
    // Predicated region
    $region14: #{tpu_custom_call.1} parent=1 // pred_check
      _
    $region15: #{tpu_custom_call.1} parent=1 // pred_check_branch
      %148 = sbr.rel (0) target = $region17
    $region16: #{tpu_custom_call.1} parent=1 // pred_region
      %150 = vsyncadd [#allocation4], 0
      %s152 = sshll.u32 [#allocation5], 4
      %s153 = int_to_ptr.vmem [resolvable:$true] %s152
      %s154 = sshll.u32 %s2, 4
      %s155 = int_to_ptr.hbm [resolvable:$true] %s154
      %157 = dma.vmem_to_hbm [thread:$0]  %s153, 128, %s155, [#allocation4]
    $region17: #{tpu_custom_call.1} parent=1 // pred_fallthru
      _
    // Predicated region
    $region18: #{tpu_custom_call.1} parent=1 // pred_check
      _
    $region19: #{tpu_custom_call.1} parent=1 // pred_check_branch
      %159 = sbr.rel (0) target = $region21
    $region20: #{tpu_custom_call.1} parent=1 // pred_region
      %161 = dma.done [#allocation4], 128
    $region21: #{tpu_custom_call.1} parent=1 // pred_fallthru
      _
    %162 = vsyncpa [#allocation3], 1
    %163 = vsyncpa [#allocation4], 1

</llo_original>
